<compile_context>
chip_gen: v7x
topology: tpu7x:2x2x1
jax: 0.10.0
libtpu: 0.0.40
codegen_flags: <defaults>
</compile_context>

<pallas_src>
import functools

import jax
import jax.numpy as jnp
from jax import lax
from jax.experimental import pallas as pl
from jax.experimental.pallas import tpu as pltpu

_CP = 128          # lane-padded width of the fused logits / output block
_T_OFF = 64        # teacher classes start at an aligned lane offset
_LOSS_LANE = _CP - 1


def _round_up(n, m):
    return ((n + m - 1) // m) * m


def _kd_kernel(x_ref, w_ref, b_ref, y_ref, out_ref, *,
               alpha, temperature, num_classes, batch, block_k,
               full_k_weight):
    """Fused teacher+student logits + vanilla-KD per-row loss.

    x_ref   : [TB, TK]        bf16  flattened-input tile
    w_ref   : [TK|D_pad, CP]  bf16  fused weight (student [0:C), teacher [64:64+C))
    b_ref   : [1, CP]         f32   fused bias
    y_ref   : [TB, 1]         int32 labels for this B tile
    out_ref : [TB, CP]        f32   accumulator + final output
                                    (lanes [0:C) student logits, lane 127 loss)
    """
    # program_id / num_programs must be read at the top level (not inside
    # pl.when bodies) — values are then closed over by the branches.
    bi = pl.program_id(0)
    ki = pl.program_id(1)
    nk = pl.num_programs(1)

    if full_k_weight:
        # Whole fused weight is resident in VMEM (fetched once for the whole
        # grid); slice the K tile in-kernel.  block_k is a multiple of 128.
        w_tile = w_ref[pl.ds(ki * block_k, block_k), :]
    else:
        w_tile = w_ref[...]

    partial = jnp.dot(x_ref[...], w_tile, preferred_element_type=jnp.float32)

    @pl.when(ki == 0)
    def _init():
        out_ref[...] = jnp.zeros_like(out_ref)

    out_ref[...] += partial

    @pl.when(ki == nk - 1)
    def _finalize():
        C = num_classes
        TB, CP = out_ref.shape

        logits = out_ref[...] + b_ref[...]            # [TB, CP] f32
        s_logit = logits[:, :C]                       # student classes
        t_logit = logits[:, _T_OFF:_T_OFF + C]        # teacher classes (aligned)

        # ---- CE: per-row -log_softmax(s)[y] ------------------------------
        s_max = jnp.max(s_logit, axis=-1, keepdims=True)
        s_shift = s_logit - s_max
        s_lse = jnp.log(jnp.sum(jnp.exp(s_shift), axis=-1, keepdims=True))
        log_p_s = s_shift - s_lse
        cls = lax.broadcasted_iota(jnp.int32, (TB, C), 1)
        y_mask = cls == y_ref[...]                    # in-kernel one-hot
        ce_row = -jnp.sum(jnp.where(y_mask, log_p_s, 0.0),
                          axis=-1, keepdims=True)

        # ---- KD: per-row KL(softmax(t/T) || softmax(s/T)) -----------------
        inv_t = jnp.float32(1.0 / temperature)
        ss_shift = s_shift * inv_t                    # s/T - max(s)/T  (T > 0)
        ss_lse = jnp.log(jnp.sum(jnp.exp(ss_shift), axis=-1, keepdims=True))
        log_q_s = ss_shift - ss_lse

        ts = t_logit * inv_t
        ts_max = jnp.max(ts, axis=-1, keepdims=True)
        ts_shift = ts - ts_max
        ts_lse = jnp.log(jnp.sum(jnp.exp(ts_shift), axis=-1, keepdims=True))
        log_p_t = ts_shift - ts_lse
        p_t = jnp.exp(log_p_t)
        kd_row = jnp.sum(p_t * (log_p_t - log_q_s), axis=-1, keepdims=True)

        # ---- per-row weighted contribution; mask padded batch rows --------
        contrib = (jnp.float32(alpha) * ce_row
                   + jnp.float32((1.0 - alpha) * temperature * temperature)
                   * kd_row)
        row_id = lax.broadcasted_iota(jnp.int32, (TB, 1), 0)
        row_valid = (bi * TB + row_id) < batch
        contrib = jnp.where(row_valid, contrib, 0.0)

        # ---- single lane-dense store: logits + loss in lane CP-1 ----------
        colp = lax.broadcasted_iota(jnp.int32, (TB, CP), 1)
        out_ref[...] = jnp.where(colp == _LOSS_LANE, contrib, logits)


def _pack_params(params, D, D_pad, C):
    """Fuse teacher+student classifiers into one bf16 [D_pad, 128] weight.

    (Built directly in bf16; for repeated calls with the same params this
    packed form can be computed once and cached by the caller.)
    """
    w_t, b_t, w_s, b_s = params
    w_f = jnp.zeros((D_pad, _CP), jnp.bfloat16)
    w_f = w_f.at[:D, :C].set(w_s.astype(jnp.bfloat16))
    w_f = w_f.at[:D, _T_OFF:_T_OFF + C].set(w_t.astype(jnp.bfloat16))
    b_f = jnp.zeros((1, _CP), jnp.float32)
    b_f = b_f.at[0, :C].set(b_s.astype(jnp.float32))
    b_f = b_f.at[0, _T_OFF:_T_OFF + C].set(b_t.astype(jnp.float32))
    return w_f, b_f


def vanilla_kd_forward(x_nchw, y, params, *, alpha=0.5, temperature=4.0,
                       block_b=512, block_k=2048):
    """JAX wrapper reproducing VanillaKDDistiller.forward -> (total_loss, s_logit)."""
    w_t, b_t, w_s, b_s = params
    B = int(x_nchw.shape[0])
    D = 1
    for d in x_nchw.shape[1:]:
        D *= int(d)
    C = int(w_s.shape[1])
    assert C <= _T_OFF - 1, "fused-lane layout requires num_classes <= 63"

    # ---- batch tiling: large TB amortizes per-step overhead, but keep at
    # least two B tiles (when the batch allows) so the "parallel" axis can be
    # sharded across the two TensorCores on v7x.
    TB = min(block_b, _round_up(B, 8))
    if TB >= 16 and _round_up(B, TB) // TB < 2:
        TB = _round_up(TB // 2, 8)
    B_pad = _round_up(B, TB)
    nb = B_pad // TB

    # ---- contraction tiling under a ~24 MiB double-buffered VMEM budget
    # (safe for v7x's 32 MiB scoped default / 64 MiB physical).
    D128 = _round_up(D, 128)
    w_full_bytes = D128 * _CP * 2
    full_k_weight = w_full_bytes <= (4 << 20)     # whole fused W stays in VMEM
    nk = max(1, -(-D128 // block_k))
    while True:
        TK = _round_up(-(-D128 // nk), 128)
        w_bytes = 2 * w_full_bytes if full_k_weight else 2 * TK * _CP * 2
        est = 2 * TB * TK * 2 + w_bytes + 2 * TB * _CP * 4 + 2 * TB * 4
        if est <= (24 << 20) or TK <= 512:
            break
        nk += 1
    D_pad = nk * TK

    # ---- pad only the ragged tail (cast + pad fuse into a single pass; no
    # materialized full-size zero buffer round-trip).
    x_bf = x_nchw.reshape(B, D).astype(jnp.bfloat16)
    if B_pad != B or D_pad != D:
        x_bf = jnp.pad(x_bf, ((0, B_pad - B), (0, D_pad - D)))
    y_i = y.astype(jnp.int32).reshape(B, 1)
    if B_pad != B:
        y_i = jnp.pad(y_i, ((0, B_pad - B), (0, 0)))

    w_f, b_f = _pack_params(params, D, D_pad, C)

    if full_k_weight:
        # Fetched exactly once for the whole grid (constant block index).
        w_spec = pl.BlockSpec((D_pad, _CP), lambda bi, ki: (0, 0))
    else:
        w_spec = pl.BlockSpec((TK, _CP), lambda bi, ki: (ki, 0))

    kernel = functools.partial(
        _kd_kernel, alpha=float(alpha), temperature=float(temperature),
        num_classes=C, batch=B, block_k=TK, full_k_weight=full_k_weight)

    out = pl.pallas_call(
        kernel,
        out_shape=jax.ShapeDtypeStruct((B_pad, _CP), jnp.float32),
        grid_spec=pltpu.PrefetchScalarGridSpec(
            num_scalar_prefetch=0,
            grid=(nb, nk),
            in_specs=[
                pl.BlockSpec((TB, TK), lambda bi, ki: (bi, ki)),   # x tile
                w_spec,                                            # fused W
                pl.BlockSpec((1, _CP), lambda bi, ki: (0, 0)),     # fused bias
                pl.BlockSpec((TB, 1), lambda bi, ki: (bi, 0)),     # labels
            ],
            out_specs=pl.BlockSpec((TB, _CP), lambda bi, ki: (bi, 0)),
        ),
        compiler_params=pltpu.CompilerParams(
            dimension_semantics=("parallel", "arbitrary"),
            vmem_limit_bytes=48 << 20),
    )(x_bf, w_f, b_f, y_i)

    s_logit = out[:B, :C]
    total_loss = jnp.sum(out[:B, _LOSS_LANE]) / B   # tiny B-length glue sum
    return total_loss, s_logit


def _reference(x_nchw, y, params, alpha, temperature):
    """Pure-JAX reference (same bf16-matmul / f32-accumulate numerics)."""
    B = x_nchw.shape[0]
    x = x_nchw.reshape(B, -1).astype(jnp.bfloat16)
    w_t, b_t, w_s, b_s = params
    t_logit = jnp.dot(x, w_t.astype(jnp.bfloat16),
                      preferred_element_type=jnp.float32) + b_t
    s_logit = jnp.dot(x, w_s.astype(jnp.bfloat16),
                      preferred_element_type=jnp.float32) + b_s
    log_p_s = jax.nn.log_softmax(s_logit, axis=-1)
    ce = -jnp.mean(jnp.take_along_axis(log_p_s, y[:, None], axis=-1))
    log_p_t = jax.nn.log_softmax(t_logit / temperature, axis=-1)
    p_t = jnp.exp(log_p_t)
    log_q_s = jax.nn.log_softmax(s_logit / temperature, axis=-1)
    kd = jnp.sum(p_t * (log_p_t - log_q_s)) / B * temperature ** 2
    return alpha * ce + (1.0 - alpha) * kd, s_logit


if __name__ == "__main__":
    # Small shapes consistent with an image-classification KD setup.
    B, C_in, H, W = 2, 4, 16, 16
    NUM_CLASSES = 10
    D = C_in * H * W
    ALPHA, TEMP = 0.5, 4.0

    key = jax.random.PRNGKey(0)
    kx, ky, kwt, kws, kbt, kbs = jax.random.split(key, 6)

    x = jax.random.normal(kx, (B, C_in, H, W), dtype=jnp.float32)
    y = jax.random.randint(ky, (B,), 0, NUM_CLASSES, dtype=jnp.int32)

    # Deterministic synthetic teacher / student linear-classifier params.
    w_t = jax.random.normal(kwt, (D, NUM_CLASSES), dtype=jnp.float32) * 0.05
    b_t = jax.random.normal(kbt, (NUM_CLASSES,), dtype=jnp.float32) * 0.01
    w_s = jax.random.normal(kws, (D, NUM_CLASSES), dtype=jnp.float32) * 0.05
    b_s = jax.random.normal(kbs, (NUM_CLASSES,), dtype=jnp.float32) * 0.01
    params = (w_t, b_t, w_s, b_s)

    total_loss, s_logit = vanilla_kd_forward(x, y, params,
                                             alpha=ALPHA, temperature=TEMP)
    jax.block_until_ready((total_loss, s_logit))

    ref_loss, ref_logit = _reference(x, y, params, ALPHA, TEMP)
    assert jnp.allclose(total_loss, ref_loss, rtol=1e-3, atol=1e-3), (total_loss, ref_loss)
    assert jnp.allclose(s_logit, ref_logit, rtol=1e-3, atol=1e-3)

    print("KERNEL_OK")
</pallas_src>

<mosaic_0001>
module attributes {stable_mosaic.version = 11 : i64} {
  func.func @_kd_kernel(%arg0: i32, %arg1: i32, %arg2: memref<8x1024xbf16, #tpu.memory_space<vmem>>, %arg3: memref<1024x128xbf16, #tpu.memory_space<vmem>>, %arg4: memref<1x128xf32, #tpu.memory_space<vmem>>, %arg5: memref<8x1xi32, #tpu.memory_space<vmem>>, %arg6: memref<8x128xf32, #tpu.memory_space<vmem>>) attributes {dimension_semantics = [#tpu.dimension_semantics<parallel>, #tpu.dimension_semantics<arbitrary>], iteration_bounds = array<i64: 1, 1>, scalar_prefetch = 0 : i64, scratch_operands = 0 : i64, tpu.core_type = #tpu.core_type<tc>, window_params = [{transform_indices = @transform_0, window_bounds = array<i64: 8, 1024>}, {pipeline_mode = #tpu.pipeline_mode<synchronous>, transform_indices = @transform_1, window_bounds = array<i64: 1024, 128>}, {pipeline_mode = #tpu.pipeline_mode<synchronous>, transform_indices = @transform_2, window_bounds = array<i64: 1, 128>}, {transform_indices = @transform_3, window_bounds = array<i64: 8, 1>}, {transform_indices = @transform_4, window_bounds = array<i64: 8, 128>}]} {
    %c1024_i32 = arith.constant 1024 : i32
    %0 = arith.muli %arg1, %c1024_i32 : i32
    %1 = arith.index_cast %0 : i32 to index
    %c0 = arith.constant 0 : index
    %2 = vector.load %arg3[%1, %c0] : memref<1024x128xbf16, #tpu.memory_space<vmem>>, vector<1024x128xbf16>
    %c0_0 = arith.constant 0 : index
    %c0_1 = arith.constant 0 : index
    %3 = vector.load %arg2[%c0_0, %c0_1] : memref<8x1024xbf16, #tpu.memory_space<vmem>>, vector<8x1024xbf16>
    %cst = arith.constant dense<0.000000e+00> : vector<8x128xf32>
    %4 = tpu.matmul %3, %2, %cst {dimension_numbers = #tpu.dot_dimension_numbers<[1], [0], [0], [1], [0, 0, 1, 1], [], []>} : vector<8x1024xbf16>, vector<1024x128xbf16>, vector<8x128xf32> -> vector<8x128xf32>
    %c0_i32 = arith.constant 0 : i32
    %5 = arith.cmpi eq, %arg1, %c0_i32 : i32
    %6 = arith.extui %5 : i1 to i32
    %c0_i32_2 = arith.constant 0 : i32
    %7 = arith.cmpi ne, %6, %c0_i32_2 : i32
    scf.if %7 {
      %cst_9 = arith.constant 0.000000e+00 : f32
      %14 = vector.broadcast %cst_9 : f32 to vector<8x128xf32>
      %c0_10 = arith.constant 0 : index
      %c0_11 = arith.constant 0 : index
      %15 = vector.load %arg6[%c0_10, %c0_11] : memref<8x128xf32, #tpu.memory_space<vmem>>, vector<8x128xf32>
      tpu.vector_store %arg6[%c0_10, %c0_11], %14 {strides = array<i32>} : memref<8x128xf32, #tpu.memory_space<vmem>>, vector<8x128xf32>,
    } else {
    }
    %c0_3 = arith.constant 0 : index
    %c0_4 = arith.constant 0 : index
    %8 = vector.load %arg6[%c0_3, %c0_4] : memref<8x128xf32, #tpu.memory_space<vmem>>, vector<8x128xf32>
    %9 = arith.addf %8, %4 : vector<8x128xf32>
    %c0_5 = arith.constant 0 : index
    %c0_6 = arith.constant 0 : index
    %10 = vector.load %arg6[%c0_5, %c0_6] : memref<8x128xf32, #tpu.memory_space<vmem>>, vector<8x128xf32>
    tpu.vector_store %arg6[%c0_5, %c0_6], %9 {strides = array<i32>} : memref<8x128xf32, #tpu.memory_space<vmem>>, vector<8x128xf32>,
    %c0_i32_7 = arith.constant 0 : i32
    %11 = arith.cmpi eq, %arg1, %c0_i32_7 : i32
    %12 = arith.extui %11 : i1 to i32
    %c0_i32_8 = arith.constant 0 : i32
    %13 = arith.cmpi ne, %12, %c0_i32_8 : i32
    scf.if %13 {
      %c0_9 = arith.constant 0 : index
      %c0_10 = arith.constant 0 : index
      %14 = vector.load %arg6[%c0_9, %c0_10] : memref<8x128xf32, #tpu.memory_space<vmem>>, vector<8x128xf32>
      %c0_11 = arith.constant 0 : index
      %c0_12 = arith.constant 0 : index
      %15 = vector.load %arg4[%c0_11, %c0_12] : memref<1x128xf32, #tpu.memory_space<vmem>>, vector<1x128xf32>
      %16 = vector.broadcast %15 : vector<1x128xf32> to vector<8x128xf32>
      %17 = arith.addf %14, %16 : vector<8x128xf32>
      %18 = vector.extract_strided_slice %17 {offsets = [0, 0], sizes = [8, 10], strides = [1, 1]} : vector<8x128xf32> to vector<8x10xf32>
      %19 = vector.extract_strided_slice %17 {offsets = [0, 64], sizes = [8, 10], strides = [1, 1]} : vector<8x128xf32> to vector<8x10xf32>
      %cst_13 = arith.constant dense<0xFF800000> : vector<8xf32>
      %20 = vector.multi_reduction <maximumf>, %18, %cst_13 [1] : vector<8x10xf32> to vector<8xf32>
      %21 = vector.shape_cast %20 : vector<8xf32> to vector<8x1xf32>
      %22 = vector.broadcast %21 : vector<8x1xf32> to vector<8x10xf32>
      %23 = arith.subf %18, %22 : vector<8x10xf32>
      %24 = math.exp %23 : vector<8x10xf32>
      %cst_14 = arith.constant dense<0.000000e+00> : vector<8xf32>
      %25 = vector.multi_reduction <add>, %24, %cst_14 [1] : vector<8x10xf32> to vector<8xf32>
      %26 = vector.shape_cast %25 : vector<8xf32> to vector<8x1xf32>
      %27 = math.log %26 : vector<8x1xf32>
      %28 = vector.broadcast %27 : vector<8x1xf32> to vector<8x10xf32>
      %29 = arith.subf %23, %28 : vector<8x10xf32>
      %30 = tpu.iota {dimensions = array<i32: 1>} : vector<8x10xi32>
      %c0_15 = arith.constant 0 : index
      %c0_16 = arith.constant 0 : index
      %31 = vector.load %arg5[%c0_15, %c0_16] : memref<8x1xi32, #tpu.memory_space<vmem>>, vector<8x1xi32>
      %32 = vector.broadcast %31 : vector<8x1xi32> to vector<8x10xi32>
      %33 = arith.cmpi eq, %30, %32 : vector<8x10xi32>
      %cst_17 = arith.constant 0.000000e+00 : f32
      %34 = vector.broadcast %cst_17 : f32 to vector<8x10xf32>
      %35 = arith.select %33, %29, %34 : vector<8x10xi1>, vector<8x10xf32>
      %cst_18 = arith.constant dense<0.000000e+00> : vector<8xf32>
      %36 = vector.multi_reduction <add>, %35, %cst_18 [1] : vector<8x10xf32> to vector<8xf32>
      %37 = vector.shape_cast %36 : vector<8xf32> to vector<8x1xf32>
      %cst_19 = arith.constant 0.000000e+00 : f32
      %38 = vector.broadcast %cst_19 : f32 to vector<8x1xf32>
      %39 = arith.subf %38, %37 : vector<8x1xf32>
      %cst_20 = arith.constant 2.500000e-01 : f32
      %40 = vector.broadcast %cst_20 : f32 to vector<8x10xf32>
      %41 = arith.mulf %23, %40 : vector<8x10xf32>
      %42 = math.exp %41 : vector<8x10xf32>
      %cst_21 = arith.constant dense<0.000000e+00> : vector<8xf32>
      %43 = vector.multi_reduction <add>, %42, %cst_21 [1] : vector<8x10xf32> to vector<8xf32>
      %44 = vector.shape_cast %43 : vector<8xf32> to vector<8x1xf32>
      %45 = math.log %44 : vector<8x1xf32>
      %46 = vector.broadcast %45 : vector<8x1xf32> to vector<8x10xf32>
      %47 = arith.subf %41, %46 : vector<8x10xf32>
      %cst_22 = arith.constant 2.500000e-01 : f32
      %48 = vector.broadcast %cst_22 : f32 to vector<8x10xf32>
      %49 = arith.mulf %19, %48 : vector<8x10xf32>
      %cst_23 = arith.constant dense<0xFF800000> : vector<8xf32>
      %50 = vector.multi_reduction <maximumf>, %49, %cst_23 [1] : vector<8x10xf32> to vector<8xf32>
      %51 = vector.shape_cast %50 : vector<8xf32> to vector<8x1xf32>
      %52 = vector.broadcast %51 : vector<8x1xf32> to vector<8x10xf32>
      %53 = arith.subf %49, %52 : vector<8x10xf32>
      %54 = math.exp %53 : vector<8x10xf32>
      %cst_24 = arith.constant dense<0.000000e+00> : vector<8xf32>
      %55 = vector.multi_reduction <add>, %54, %cst_24 [1] : vector<8x10xf32> to vector<8xf32>
      %56 = vector.shape_cast %55 : vector<8xf32> to vector<8x1xf32>
      %57 = math.log %56 : vector<8x1xf32>
      %58 = vector.broadcast %57 : vector<8x1xf32> to vector<8x10xf32>
      %59 = arith.subf %53, %58 : vector<8x10xf32>
      %60 = math.exp %59 : vector<8x10xf32>
      %61 = arith.subf %59, %47 : vector<8x10xf32>
      %62 = arith.mulf %60, %61 : vector<8x10xf32>
      %cst_25 = arith.constant dense<0.000000e+00> : vector<8xf32>
      %63 = vector.multi_reduction <add>, %62, %cst_25 [1] : vector<8x10xf32> to vector<8xf32>
      %64 = vector.shape_cast %63 : vector<8xf32> to vector<8x1xf32>
      %cst_26 = arith.constant 5.000000e-01 : f32
      %65 = vector.broadcast %cst_26 : f32 to vector<8x1xf32>
      %66 = arith.mulf %65, %39 : vector<8x1xf32>
      %cst_27 = arith.constant 8.000000e+00 : f32
      %67 = vector.broadcast %cst_27 : f32 to vector<8x1xf32>
      %68 = arith.mulf %67, %64 : vector<8x1xf32>
      %69 = arith.addf %66, %68 : vector<8x1xf32>
      %70 = tpu.iota {dimensions = array<i32: 0>} : vector<8x1xi32>
      %c8_i32 = arith.constant 8 : i32
      %71 = arith.muli %arg0, %c8_i32 : i32
      %72 = vector.broadcast %71 : i32 to vector<8x1xi32>
      %73 = arith.addi %72, %70 : vector<8x1xi32>
      %c2_i32 = arith.constant 2 : i32
      %74 = vector.broadcast %c2_i32 : i32 to vector<8x1xi32>
      %75 = arith.cmpi slt, %73, %74 : vector<8x1xi32>
      %cst_28 = arith.constant 0.000000e+00 : f32
      %76 = vector.broadcast %cst_28 : f32 to vector<8x1xf32>
      %77 = arith.select %75, %69, %76 : vector<8x1xi1>, vector<8x1xf32>
      %78 = tpu.iota {dimensions = array<i32: 1>} : vector<8x128xi32>
      %c127_i32 = arith.constant 127 : i32
      %79 = vector.broadcast %c127_i32 : i32 to vector<8x128xi32>
      %80 = arith.cmpi eq, %78, %79 : vector<8x128xi32>
      %81 = vector.shape_cast %77 : vector<8x1xf32> to vector<8x1xf32>
      %82 = vector.broadcast %81 : vector<8x1xf32> to vector<8x128xf32>
      %83 = arith.select %80, %82, %17 : vector<8x128xi1>, vector<8x128xf32>
      %c0_29 = arith.constant 0 : index
      %c0_30 = arith.constant 0 : index
      %84 = vector.load %arg6[%c0_29, %c0_30] : memref<8x128xf32, #tpu.memory_space<vmem>>, vector<8x128xf32>
      tpu.vector_store %arg6[%c0_29, %c0_30], %83 {strides = array<i32>} : memref<8x128xf32, #tpu.memory_space<vmem>>, vector<8x128xf32>,
    } else {
    }
    return
  }
  func.func @transform_0(%arg0: i32, %arg1: i32) -> (i32, i32) {
    %c0_i32 = arith.constant 0 : i32
    return %arg0, %arg1 : i32, i32
  }
  func.func @transform_1(%arg0: i32, %arg1: i32) -> (i32, i32) {
    %c0_i32 = arith.constant 0 : i32
    %c0_i32_0 = arith.constant 0 : i32
    %c0_i32_1 = arith.constant 0 : i32
    return %c0_i32, %c0_i32_0 : i32, i32
  }
  func.func @transform_2(%arg0: i32, %arg1: i32) -> (i32, i32) {
    %c0_i32 = arith.constant 0 : i32
    %c0_i32_0 = arith.constant 0 : i32
    %c0_i32_1 = arith.constant 0 : i32
    return %c0_i32, %c0_i32_0 : i32, i32
  }
  func.func @transform_3(%arg0: i32, %arg1: i32) -> (i32, i32) {
    %c0_i32 = arith.constant 0 : i32
    %c0_i32_0 = arith.constant 0 : i32
    return %arg0, %c0_i32 : i32, i32
  }
  func.func @transform_4(%arg0: i32, %arg1: i32) -> (i32, i32) {
    %c0_i32 = arith.constant 0 : i32
    %c0_i32_0 = arith.constant 0 : i32
    return %arg0, %c0_i32 : i32, i32
  }
}

</mosaic_0001>

<llo_original>
// kernel: tpu_custom_call.1
$region0: #{tpu_custom_call.1}
  #allocation0 [shape = 'u32[]', space=smem, size = 0x4, offset = 0x4, fixed_abs, tag = 'smem constant byte address 0x4 - core index']
  #allocation1 [shape = 'u32[144,128]{1,0:T(1,128)}', space=vmem, size = 0x12000, scoped, tag = 'internal scratch']
  %s0 = inlined_call_operand.hbm [shape: bf16[8,1024], index: 0, kind: input, shape index: {}]
  %s1 = inlined_call_operand.hbm [shape: bf16[1024,128], index: 1, kind: input, shape index: {}]
  %s2 = inlined_call_operand.vmem [shape: f32[1,128], index: 2, kind: input, shape index: {}]
  %s3 = inlined_call_operand.vmem [shape: s32[8,1], index: 3, kind: input, shape index: {}]
  %s4 = inlined_call_operand.hbm [shape: f32[8,128], index: 4, kind: output, shape index: {}]
  %s5 = sld [smem:[#allocation0]]
  $region42: #{tpu_custom_call.1} parent=0
    _
  %s7 = ssub.s32 1, %s5
  %s8 = scalar_select 0, %s7, %s5
  $region1: #{tpu_custom_call.1} parent=0
    #allocation2 [shape = 'u8[16384]{0}', space=vmem, size = 0x4000, scoped, tag = 'input window, operand 0, single buffered']
    #allocation3 [shape = 's32[1]{0}', space=sflag, size = 0x4, scoped, tag = 'scoped memory for tpu_custom_call.1']
    #allocation4 [shape = 's32[1]{0}', space=sflag, size = 0x4, scoped, tag = 'scoped memory for tpu_custom_call.1']
    #allocation5 [shape = 'u8[262144]{0}', space=vmem, size = 0x40000, scoped, tag = 'input window, operand 1, single buffered']
    #allocation6 [shape = 's32[1]{0}', space=sflag, size = 0x4, scoped, tag = 'scoped memory for tpu_custom_call.1']
    #allocation7 [shape = 'u8[4096]{0}', space=vmem, size = 0x1000, scoped, tag = 'output window, operand 0, single buffered']
    %9 = vsyncpa [#allocation3], 0
    %10 = vsyncpa [#allocation6], 0
    %11 = vsyncpa [#allocation4], 0
    // Predicated region
    $region2: #{tpu_custom_call.1} parent=1 // pred_check
      _
    $region3: #{tpu_custom_call.1} parent=1 // pred_check_branch
      %13 = sbr.rel (0) target = $region5
    $region4: #{tpu_custom_call.1} parent=1 // pred_region
      %s15 = ssub.s32 512, 512
      %16 = vsyncadd [#allocation3], %s15
      %s18 = sshll.u32 [#allocation2], 4
      %s19 = int_to_ptr.vmem [resolvable:$true] %s18
      %21 = dma.hbm_to_vmem [thread:$0]  %s0, 512, %s19, [#allocation3]
    $region5: #{tpu_custom_call.1} parent=1 // pred_fallthru
      _
    // Predicated region
    $region6: #{tpu_custom_call.1} parent=1 // pred_check
      _
    $region7: #{tpu_custom_call.1} parent=1 // pred_check_branch
      %23 = sbr.rel (0) target = $region9
    $region8: #{tpu_custom_call.1} parent=1 // pred_region
      %s25 = ssub.s32 8192, 8192
      %26 = vsyncadd [#allocation6], %s25
      %s27 = sshll.u32 [#allocation5], 4
      %s28 = int_to_ptr.vmem [resolvable:$true] %s27
      %33 = dma.hbm_to_vmem [thread:$0]  %s1, 8192, %s28, [#allocation6], 64, 64, 4
    $region9: #{tpu_custom_call.1} parent=1 // pred_fallthru
      _
    // Predicated region
    $region10: #{tpu_custom_call.1} parent=1 // pred_check
      _
    $region11: #{tpu_custom_call.1} parent=1 // pred_check_branch
      %35 = sbr.rel (0) target = $region13
    $region12: #{tpu_custom_call.1} parent=1 // pred_region
      _
    $region13: #{tpu_custom_call.1} parent=1 // pred_fallthru
      _
    // Predicated region
    $region14: #{tpu_custom_call.1} parent=1 // pred_check
      _
    $region15: #{tpu_custom_call.1} parent=1 // pred_check_branch
      %37 = sbr.rel (0) target = $region17
    $region16: #{tpu_custom_call.1} parent=1 // pred_region
      _
    $region17: #{tpu_custom_call.1} parent=1 // pred_fallthru
      _
    // Predicated region
    $region18: #{tpu_custom_call.1} parent=1 // pred_check
      _
    $region19: #{tpu_custom_call.1} parent=1 // pred_check_branch
      %39 = sbr.rel (0) target = $region21
    $region20: #{tpu_custom_call.1} parent=1 // pred_region
      %40 = dma.done [#allocation3], 512
    $region21: #{tpu_custom_call.1} parent=1 // pred_fallthru
      _
    // Predicated region
    $region22: #{tpu_custom_call.1} parent=1 // pred_check
      _
    $region23: #{tpu_custom_call.1} parent=1 // pred_check_branch
      %42 = sbr.rel (0) target = $region25
    $region24: #{tpu_custom_call.1} parent=1 // pred_region
      %43 = dma.done [#allocation6], 8192
    $region25: #{tpu_custom_call.1} parent=1 // pred_fallthru
      _
    %s45 = smul.u32 0, 1024
    %s46 = sshra.s32 %s45, 3
    %s47 = sand.u32 %s45, 7
    %s48 = smul.addr %s46, 4
    %s49 = scalar_lea.vmem [#allocation5], %s48
    %v50 = vld [vmem:[%s49] sm:$0xf]
    %v51 = vld [vmem:[%s49 + $0x4] sm:$0xf]
    %v52 = vld [vmem:[%s49 + $0x8] sm:$0xf]
    %v53 = vld [vmem:[%s49 + $0xc] sm:$0xf]
    %v54 = vld [vmem:[%s49 + $0x10] sm:$0xf]
    %v55 = vld [vmem:[%s49 + $0x14] sm:$0xf]
    %v56 = vld [vmem:[%s49 + $0x18] sm:$0xf]
    %v57 = vld [vmem:[%s49 + $0x1c] sm:$0xf]
    %v58 = vld [vmem:[%s49 + $0x20] sm:$0xf]
    %v59 = vld [vmem:[%s49 + $0x24] sm:$0xf]
    %v60 = vld [vmem:[%s49 + $0x28] sm:$0xf]
    %v61 = vld [vmem:[%s49 + $0x2c] sm:$0xf]
    %v62 = vld [vmem:[%s49 + $0x30] sm:$0xf]
    %v63 = vld [vmem:[%s49 + $0x34] sm:$0xf]
    %v64 = vld [vmem:[%s49 + $0x38] sm:$0xf]
    %v65 = vld [vmem:[%s49 + $0x3c] sm:$0xf]
    %v66 = vld [vmem:[%s49 + $0x40] sm:$0xf]
    %v67 = vld [vmem:[%s49 + $0x44] sm:$0xf]
    %v68 = vld [vmem:[%s49 + $0x48] sm:$0xf]
    %v69 = vld [vmem:[%s49 + $0x4c] sm:$0xf]
    %v70 = vld [vmem:[%s49 + $0x50] sm:$0xf]
    %v71 = vld [vmem:[%s49 + $0x54] sm:$0xf]
    %v72 = vld [vmem:[%s49 + $0x58] sm:$0xf]
    %v73 = vld [vmem:[%s49 + $0x5c] sm:$0xf]
    %v74 = vld [vmem:[%s49 + $0x60] sm:$0xf]
    %v75 = vld [vmem:[%s49 + $0x64] sm:$0xf]
    %v76 = vld [vmem:[%s49 + $0x68] sm:$0xf]
    %v77 = vld [vmem:[%s49 + $0x6c] sm:$0xf]
    %v78 = vld [vmem:[%s49 + $0x70] sm:$0xf]
    %v79 = vld [vmem:[%s49 + $0x74] sm:$0xf]
    %v80 = vld [vmem:[%s49 + $0x78] sm:$0xf]
    %v81 = vld [vmem:[%s49 + $0x7c] sm:$0xf]
    %v82 = vld [vmem:[%s49 + $0x80] sm:$0xf]
    %v83 = vld [vmem:[%s49 + $0x84] sm:$0xf]
    %v84 = vld [vmem:[%s49 + $0x88] sm:$0xf]
    %v85 = vld [vmem:[%s49 + $0x8c] sm:$0xf]
    %v86 = vld [vmem:[%s49 + $0x90] sm:$0xf]
    %v87 = vld [vmem:[%s49 + $0x94] sm:$0xf]
    %v88 = vld [vmem:[%s49 + $0x98] sm:$0xf]
    %v89 = vld [vmem:[%s49 + $0x9c] sm:$0xf]
    %v90 = vld [vmem:[%s49 + $0xa0] sm:$0xf]
    %v91 = vld [vmem:[%s49 + $0xa4] sm:$0xf]
    %v92 = vld [vmem:[%s49 + $0xa8] sm:$0xf]
    %v93 = vld [vmem:[%s49 + $0xac] sm:$0xf]
    %v94 = vld [vmem:[%s49 + $0xb0] sm:$0xf]
    %v95 = vld [vmem:[%s49 + $0xb4] sm:$0xf]
    %v96 = vld [vmem:[%s49 + $0xb8] sm:$0xf]
    %v97 = vld [vmem:[%s49 + $0xbc] sm:$0xf]
    %v98 = vld [vmem:[%s49 + $0xc0] sm:$0xf]
    %v99 = vld [vmem:[%s49 + $0xc4] sm:$0xf]
    %v100 = vld [vmem:[%s49 + $0xc8] sm:$0xf]
    %v101 = vld [vmem:[%s49 + $0xcc] sm:$0xf]
    %v102 = vld [vmem:[%s49 + $0xd0] sm:$0xf]
    %v103 = vld [vmem:[%s49 + $0xd4] sm:$0xf]
    %v104 = vld [vmem:[%s49 + $0xd8] sm:$0xf]
    %v105 = vld [vmem:[%s49 + $0xdc] sm:$0xf]
    %v106 = vld [vmem:[%s49 + $0xe0] sm:$0xf]
    %v107 = vld [vmem:[%s49 + $0xe4] sm:$0xf]
    %v108 = vld [vmem:[%s49 + $0xe8] sm:$0xf]
    %v109 = vld [vmem:[%s49 + $0xec] sm:$0xf]
    %v110 = vld [vmem:[%s49 + $0xf0] sm:$0xf]
    %v111 = vld [vmem:[%s49 + $0xf4] sm:$0xf]
    %v112 = vld [vmem:[%s49 + $0xf8] sm:$0xf]
    %v113 = vld [vmem:[%s49 + $0xfc] sm:$0xf]
    %v114 = vld [vmem:[%s49 + $0x100] sm:$0xf]
    %v115 = vld [vmem:[%s49 + $0x104] sm:$0xf]
    %v116 = vld [vmem:[%s49 + $0x108] sm:$0xf]
    %v117 = vld [vmem:[%s49 + $0x10c] sm:$0xf]
    %v118 = vld [vmem:[%s49 + $0x110] sm:$0xf]
    %v119 = vld [vmem:[%s49 + $0x114] sm:$0xf]
    %v120 = vld [vmem:[%s49 + $0x118] sm:$0xf]
    %v121 = vld [vmem:[%s49 + $0x11c] sm:$0xf]
    %v122 = vld [vmem:[%s49 + $0x120] sm:$0xf]
    %v123 = vld [vmem:[%s49 + $0x124] sm:$0xf]
    %v124 = vld [vmem:[%s49 + $0x128] sm:$0xf]
    %v125 = vld [vmem:[%s49 + $0x12c] sm:$0xf]
    %v126 = vld [vmem:[%s49 + $0x130] sm:$0xf]
    %v127 = vld [vmem:[%s49 + $0x134] sm:$0xf]
    %v128 = vld [vmem:[%s49 + $0x138] sm:$0xf]
    %v129 = vld [vmem:[%s49 + $0x13c] sm:$0xf]
    %v130 = vld [vmem:[%s49 + $0x140] sm:$0xf]
    %v131 = vld [vmem:[%s49 + $0x144] sm:$0xf]
    %v132 = vld [vmem:[%s49 + $0x148] sm:$0xf]
    %v133 = vld [vmem:[%s49 + $0x14c] sm:$0xf]
    %v134 = vld [vmem:[%s49 + $0x150] sm:$0xf]
    %v135 = vld [vmem:[%s49 + $0x154] sm:$0xf]
    %v136 = vld [vmem:[%s49 + $0x158] sm:$0xf]
    %v137 = vld [vmem:[%s49 + $0x15c] sm:$0xf]
    %v138 = vld [vmem:[%s49 + $0x160] sm:$0xf]
    %v139 = vld [vmem:[%s49 + $0x164] sm:$0xf]
    %v140 = vld [vmem:[%s49 + $0x168] sm:$0xf]
    %v141 = vld [vmem:[%s49 + $0x16c] sm:$0xf]
    %v142 = vld [vmem:[%s49 + $0x170] sm:$0xf]
    %v143 = vld [vmem:[%s49 + $0x174] sm:$0xf]
    %v144 = vld [vmem:[%s49 + $0x178] sm:$0xf]
    %v145 = vld [vmem:[%s49 + $0x17c] sm:$0xf]
    %v146 = vld [vmem:[%s49 + $0x180] sm:$0xf]
    %v147 = vld [vmem:[%s49 + $0x184] sm:$0xf]
    %v148 = vld [vmem:[%s49 + $0x188] sm:$0xf]
    %v149 = vld [vmem:[%s49 + $0x18c] sm:$0xf]
    %v150 = vld [vmem:[%s49 + $0x190] sm:$0xf]
    %v151 = vld [vmem:[%s49 + $0x194] sm:$0xf]
    %v152 = vld [vmem:[%s49 + $0x198] sm:$0xf]
    %v153 = vld [vmem:[%s49 + $0x19c] sm:$0xf]
    %v154 = vld [vmem:[%s49 + $0x1a0] sm:$0xf]
    %v155 = vld [vmem:[%s49 + $0x1a4] sm:$0xf]
    %v156 = vld [vmem:[%s49 + $0x1a8] sm:$0xf]
    %v157 = vld [vmem:[%s49 + $0x1ac] sm:$0xf]
    %v158 = vld [vmem:[%s49 + $0x1b0] sm:$0xf]
    %v159 = vld [vmem:[%s49 + $0x1b4] sm:$0xf]
    %v160 = vld [vmem:[%s49 + $0x1b8] sm:$0xf]
    %v161 = vld [vmem:[%s49 + $0x1bc] sm:$0xf]
    %v162 = vld [vmem:[%s49 + $0x1c0] sm:$0xf]
    %v163 = vld [vmem:[%s49 + $0x1c4] sm:$0xf]
    %v164 = vld [vmem:[%s49 + $0x1c8] sm:$0xf]
    %v165 = vld [vmem:[%s49 + $0x1cc] sm:$0xf]
    %v166 = vld [vmem:[%s49 + $0x1d0] sm:$0xf]
    %v167 = vld [vmem:[%s49 + $0x1d4] sm:$0xf]
    %v168 = vld [vmem:[%s49 + $0x1d8] sm:$0xf]
    %v169 = vld [vmem:[%s49 + $0x1dc] sm:$0xf]
    %v170 = vld [vmem:[%s49 + $0x1e0] sm:$0xf]
    %v171 = vld [vmem:[%s49 + $0x1e4] sm:$0xf]
    %v172 = vld [vmem:[%s49 + $0x1e8] sm:$0xf]
    %v173 = vld [vmem:[%s49 + $0x1ec] sm:$0xf]
    %v174 = vld [vmem:[%s49 + $0x1f0] sm:$0xf]
    %v175 = vld [vmem:[%s49 + $0x1f4] sm:$0xf]
    %v176 = vld [vmem:[%s49 + $0x1f8] sm:$0xf]
    %v177 = vld [vmem:[%s49 + $0x1fc] sm:$0xf]
    %v178 = vld [vmem:[#allocation2] sm:$0xff]
    %v179 = vld [vmem:[#allocation2 + $0x8] sm:$0xff]
    %v180 = vld [vmem:[#allocation2 + $0x10] sm:$0xff]
    %v181 = vld [vmem:[#allocation2 + $0x18] sm:$0xff]
    %v186 = vunpack.c.l.b16 %v178
    %v187 = vunpack.c.h.b16 %v178
    %v188 = vunpack.c.l.b16 %v179
    %v189 = vunpack.c.h.b16 %v179
    %v190 = vunpack.c.l.b16 %v180
    %v191 = vunpack.c.h.b16 %v180
    %v192 = vunpack.c.l.b16 %v181
    %v193 = vunpack.c.h.b16 %v181
    %v194 = vpack.c.b16 %v186, %v186
    %v195 = vpack.c.b16 %v187, %v187
    %v196 = vpack.c.b16 %v188, %v188
    %v197 = vpack.c.b16 %v189, %v189
    %v198 = vpack.c.b16 %v190, %v190
    %v199 = vpack.c.b16 %v191, %v191
    %v200 = vpack.c.b16 %v192, %v192
    %v201 = vpack.c.b16 %v193, %v193
    %v338 = vunpack.c.l.b16 %v50
    %v339 = vunpack.c.l.b16 %v51
    %v340 = vunpack.c.l.b16 %v52
    %v341 = vunpack.c.l.b16 %v53
    %v342 = vunpack.c.l.b16 %v54
    %v343 = vunpack.c.l.b16 %v55
    %v344 = vunpack.c.l.b16 %v56
    %v345 = vunpack.c.l.b16 %v57
    %v346 = vunpack.c.l.b16 %v58
    %v347 = vunpack.c.l.b16 %v59
    %v348 = vunpack.c.l.b16 %v60
    %v349 = vunpack.c.l.b16 %v61
    %v350 = vunpack.c.l.b16 %v62
    %v351 = vunpack.c.l.b16 %v63
    %v352 = vunpack.c.l.b16 %v64
    %v353 = vunpack.c.l.b16 %v65
    %v354 = vunpack.c.l.b16 %v66
    %v355 = vunpack.c.l.b16 %v67
    %v356 = vunpack.c.l.b16 %v68
    %v357 = vunpack.c.l.b16 %v69
    %v358 = vunpack.c.l.b16 %v70
    %v359 = vunpack.c.l.b16 %v71
    %v360 = vunpack.c.l.b16 %v72
    %v361 = vunpack.c.l.b16 %v73
    %v362 = vunpack.c.l.b16 %v74
    %v363 = vunpack.c.l.b16 %v75
    %v364 = vunpack.c.l.b16 %v76
    %v365 = vunpack.c.l.b16 %v77
    %v366 = vunpack.c.l.b16 %v78
    %v367 = vunpack.c.l.b16 %v79
    %v368 = vunpack.c.l.b16 %v80
    %v369 = vunpack.c.l.b16 %v81
    %v370 = vunpack.c.l.b16 %v82
    %v371 = vunpack.c.l.b16 %v83
    %v372 = vunpack.c.l.b16 %v84
    %v373 = vunpack.c.l.b16 %v85
    %v374 = vunpack.c.l.b16 %v86
    %v375 = vunpack.c.l.b16 %v87
    %v376 = vunpack.c.l.b16 %v88
    %v377 = vunpack.c.l.b16 %v89
    %v378 = vunpack.c.l.b16 %v90
    %v379 = vunpack.c.l.b16 %v91
    %v380 = vunpack.c.l.b16 %v92
    %v381 = vunpack.c.l.b16 %v93
    %v382 = vunpack.c.l.b16 %v94
    %v383 = vunpack.c.l.b16 %v95
    %v384 = vunpack.c.l.b16 %v96
    %v385 = vunpack.c.l.b16 %v97
    %v386 = vunpack.c.l.b16 %v98
    %v387 = vunpack.c.l.b16 %v99
    %v388 = vunpack.c.l.b16 %v100
    %v389 = vunpack.c.l.b16 %v101
    %v390 = vunpack.c.l.b16 %v102
    %v391 = vunpack.c.l.b16 %v103
    %v392 = vunpack.c.l.b16 %v104
    %v393 = vunpack.c.l.b16 %v105
    %v394 = vunpack.c.l.b16 %v106
    %v395 = vunpack.c.l.b16 %v107
    %v396 = vunpack.c.l.b16 %v108
    %v397 = vunpack.c.l.b16 %v109
    %v398 = vunpack.c.l.b16 %v110
    %v399 = vunpack.c.l.b16 %v111
    %v400 = vunpack.c.l.b16 %v112
    %v401 = vunpack.c.l.b16 %v113
    %v402 = vunpack.c.l.b16 %v114
    %v403 = vunpack.c.l.b16 %v115
    %v404 = vunpack.c.l.b16 %v116
    %v405 = vunpack.c.l.b16 %v117
    %v406 = vunpack.c.l.b16 %v118
    %v407 = vunpack.c.l.b16 %v119
    %v408 = vunpack.c.l.b16 %v120
    %v409 = vunpack.c.l.b16 %v121
    %v410 = vunpack.c.l.b16 %v122
    %v411 = vunpack.c.l.b16 %v123
    %v412 = vunpack.c.l.b16 %v124
    %v413 = vunpack.c.l.b16 %v125
    %v414 = vunpack.c.l.b16 %v126
    %v415 = vunpack.c.l.b16 %v127
    %v416 = vunpack.c.l.b16 %v128
    %v417 = vunpack.c.l.b16 %v129
    %v418 = vunpack.c.l.b16 %v130
    %v419 = vunpack.c.l.b16 %v131
    %v420 = vunpack.c.l.b16 %v132
    %v421 = vunpack.c.l.b16 %v133
    %v422 = vunpack.c.l.b16 %v134
    %v423 = vunpack.c.l.b16 %v135
    %v424 = vunpack.c.l.b16 %v136
    %v425 = vunpack.c.l.b16 %v137
    %v426 = vunpack.c.l.b16 %v138
    %v427 = vunpack.c.l.b16 %v139
    %v428 = vunpack.c.l.b16 %v140
    %v429 = vunpack.c.l.b16 %v141
    %v430 = vunpack.c.l.b16 %v142
    %v431 = vunpack.c.l.b16 %v143
    %v432 = vunpack.c.l.b16 %v144
    %v433 = vunpack.c.l.b16 %v145
    %v434 = vunpack.c.l.b16 %v146
    %v435 = vunpack.c.l.b16 %v147
    %v436 = vunpack.c.l.b16 %v148
    %v437 = vunpack.c.l.b16 %v149
    %v438 = vunpack.c.l.b16 %v150
    %v439 = vunpack.c.l.b16 %v151
    %v440 = vunpack.c.l.b16 %v152
    %v441 = vunpack.c.l.b16 %v153
    %v442 = vunpack.c.l.b16 %v154
    %v443 = vunpack.c.l.b16 %v155
    %v444 = vunpack.c.l.b16 %v156
    %v445 = vunpack.c.l.b16 %v157
    %v446 = vunpack.c.l.b16 %v158
    %v447 = vunpack.c.l.b16 %v159
    %v448 = vunpack.c.l.b16 %v160
    %v449 = vunpack.c.l.b16 %v161
    %v450 = vunpack.c.l.b16 %v162
    %v451 = vunpack.c.l.b16 %v163
    %v452 = vunpack.c.l.b16 %v164
    %v453 = vunpack.c.l.b16 %v165
    %v454 = vunpack.c.l.b16 %v166
    %v455 = vunpack.c.l.b16 %v167
    %v456 = vunpack.c.l.b16 %v168
    %v457 = vunpack.c.l.b16 %v169
    %v458 = vunpack.c.l.b16 %v170
    %v459 = vunpack.c.l.b16 %v171
    %v460 = vunpack.c.l.b16 %v172
    %v461 = vunpack.c.l.b16 %v173
    %v462 = vunpack.c.l.b16 %v174
    %v463 = vunpack.c.l.b16 %v175
    %v464 = vunpack.c.l.b16 %v176
    %v465 = vunpack.c.l.b16 %v177
    %v466 = vpack.c.b16 %v339, %v338
    %v467 = vpack.c.b16 %v341, %v340
    %v468 = vpack.c.b16 %v343, %v342
    %v469 = vpack.c.b16 %v345, %v344
    %v470 = vpack.c.b16 %v347, %v346
    %v471 = vpack.c.b16 %v349, %v348
    %v472 = vpack.c.b16 %v351, %v350
    %v473 = vpack.c.b16 %v353, %v352
    %v474 = vpack.c.b16 %v355, %v354
    %v475 = vpack.c.b16 %v357, %v356
    %v476 = vpack.c.b16 %v359, %v358
    %v477 = vpack.c.b16 %v361, %v360
    %v478 = vpack.c.b16 %v363, %v362
    %v479 = vpack.c.b16 %v365, %v364
    %v480 = vpack.c.b16 %v367, %v366
    %v481 = vpack.c.b16 %v369, %v368
    %v482 = vpack.c.b16 %v371, %v370
    %v483 = vpack.c.b16 %v373, %v372
    %v484 = vpack.c.b16 %v375, %v374
    %v485 = vpack.c.b16 %v377, %v376
    %v486 = vpack.c.b16 %v379, %v378
    %v487 = vpack.c.b16 %v381, %v380
    %v488 = vpack.c.b16 %v383, %v382
    %v489 = vpack.c.b16 %v385, %v384
    %v490 = vpack.c.b16 %v387, %v386
    %v491 = vpack.c.b16 %v389, %v388
    %v492 = vpack.c.b16 %v391, %v390
    %v493 = vpack.c.b16 %v393, %v392
    %v494 = vpack.c.b16 %v395, %v394
    %v495 = vpack.c.b16 %v397, %v396
    %v496 = vpack.c.b16 %v399, %v398
    %v497 = vpack.c.b16 %v401, %v400
    %v498 = vpack.c.b16 %v403, %v402
    %v499 = vpack.c.b16 %v405, %v404
    %v500 = vpack.c.b16 %v407, %v406
    %v501 = vpack.c.b16 %v409, %v408
    %v502 = vpack.c.b16 %v411, %v410
    %v503 = vpack.c.b16 %v413, %v412
    %v504 = vpack.c.b16 %v415, %v414
    %v505 = vpack.c.b16 %v417, %v416
    %v506 = vpack.c.b16 %v419, %v418
    %v507 = vpack.c.b16 %v421, %v420
    %v508 = vpack.c.b16 %v423, %v422
    %v509 = vpack.c.b16 %v425, %v424
    %v510 = vpack.c.b16 %v427, %v426
    %v511 = vpack.c.b16 %v429, %v428
    %v512 = vpack.c.b16 %v431, %v430
    %v513 = vpack.c.b16 %v433, %v432
    %v514 = vpack.c.b16 %v435, %v434
    %v515 = vpack.c.b16 %v437, %v436
    %v516 = vpack.c.b16 %v439, %v438
    %v517 = vpack.c.b16 %v441, %v440
    %v518 = vpack.c.b16 %v443, %v442
    %v519 = vpack.c.b16 %v445, %v444
    %v520 = vpack.c.b16 %v447, %v446
    %v521 = vpack.c.b16 %v449, %v448
    %v522 = vpack.c.b16 %v451, %v450
    %v523 = vpack.c.b16 %v453, %v452
    %v524 = vpack.c.b16 %v455, %v454
    %v525 = vpack.c.b16 %v457, %v456
    %v526 = vpack.c.b16 %v459, %v458
    %v527 = vpack.c.b16 %v461, %v460
    %v528 = vpack.c.b16 %v463, %v462
    %v529 = vpack.c.b16 %v465, %v464
    %594 = vmatprep.subr.bf16.mxu0 0
    %595 = vmatpush1.bf16.msra.mxu0 %v466
    %596 = vmatprep.subr.bf16.mxu0 0
    %597 = vmatpush1.bf16.msra.mxu0 %v467
    %598 = vmatprep.subr.bf16.mxu0 0
    %599 = vmatpush1.bf16.msra.mxu0 %v468
    %600 = vmatprep.subr.bf16.mxu0 0
    %601 = vmatpush1.bf16.msra.mxu0 %v469
    %602 = vmatprep.subr.bf16.mxu0 0
    %603 = vmatpush1.bf16.msra.mxu0 %v470
    %604 = vmatprep.subr.bf16.mxu0 0
    %605 = vmatpush1.bf16.msra.mxu0 %v471
    %606 = vmatprep.subr.bf16.mxu0 0
    %607 = vmatpush1.bf16.msra.mxu0 %v472
    %608 = vmatprep.subr.bf16.mxu0 0
    %609 = vmatpush1.bf16.msra.mxu0 %v473
    %610 = vmatprep.subr.bf16.mxu0 0
    %611 = vmatpush1.bf16.msra.mxu0 %v474
    %612 = vmatprep.subr.bf16.mxu0 0
    %613 = vmatpush1.bf16.msra.mxu0 %v475
    %614 = vmatprep.subr.bf16.mxu0 0
    %615 = vmatpush1.bf16.msra.mxu0 %v476
    %616 = vmatprep.subr.bf16.mxu0 0
    %617 = vmatpush1.bf16.msra.mxu0 %v477
    %618 = vmatprep.subr.bf16.mxu0 0
    %619 = vmatpush1.bf16.msra.mxu0 %v478
    %620 = vmatprep.subr.bf16.mxu0 0
    %621 = vmatpush1.bf16.msra.mxu0 %v479
    %622 = vmatprep.subr.bf16.mxu0 0
    %623 = vmatpush1.bf16.msra.mxu0 %v480
    %624 = vmatprep.subr.bf16.mxu0 0
    %625 = vmatpush1.bf16.msra.mxu0 %v481
    %626 = vmatprep.mubr.bf16.mxu0 %v195
    %627 = vmatmul.mubr.bf16.gmra.mrb[0].mxu0 %v194
    %v628 = vpop.f32.mrb[0].mxu0
    %v629 = vadd.f32 0.0, %v628
    %v630 = vpop.f32.mrb[0].mxu0
    %v631 = vpop.f32.mrb[0].mxu0
    %v632 = vpop.f32.mrb[0].mxu0
    %633 = vdwg.mxu0
    %634 = vmatprep.subr.bf16.mxu0 0
    %635 = vmatpush1.bf16.msra.mxu0 %v482
    %636 = vmatprep.subr.bf16.mxu0 0
    %637 = vmatpush1.bf16.msra.mxu0 %v483
    %638 = vmatprep.subr.bf16.mxu0 0
    %639 = vmatpush1.bf16.msra.mxu0 %v484
    %640 = vmatprep.subr.bf16.mxu0 0
    %641 = vmatpush1.bf16.msra.mxu0 %v485
    %642 = vmatprep.subr.bf16.mxu0 0
    %643 = vmatpush1.bf16.msra.mxu0 %v486
    %644 = vmatprep.subr.bf16.mxu0 0
    %645 = vmatpush1.bf16.msra.mxu0 %v487
    %646 = vmatprep.subr.bf16.mxu0 0
    %647 = vmatpush1.bf16.msra.mxu0 %v488
    %648 = vmatprep.subr.bf16.mxu0 0
    %649 = vmatpush1.bf16.msra.mxu0 %v489
    %650 = vmatprep.subr.bf16.mxu0 0
    %651 = vmatpush1.bf16.msra.mxu0 %v490
    %652 = vmatprep.subr.bf16.mxu0 0
    %653 = vmatpush1.bf16.msra.mxu0 %v491
    %654 = vmatprep.subr.bf16.mxu0 0
    %655 = vmatpush1.bf16.msra.mxu0 %v492
    %656 = vmatprep.subr.bf16.mxu0 0
    %657 = vmatpush1.bf16.msra.mxu0 %v493
    %658 = vmatprep.subr.bf16.mxu0 0
    %659 = vmatpush1.bf16.msra.mxu0 %v494
    %660 = vmatprep.subr.bf16.mxu0 0
    %661 = vmatpush1.bf16.msra.mxu0 %v495
    %662 = vmatprep.subr.bf16.mxu0 0
    %663 = vmatpush1.bf16.msra.mxu0 %v496
    %664 = vmatprep.subr.bf16.mxu0 0
    %665 = vmatpush1.bf16.msra.mxu0 %v497
    %666 = vmatprep.mubr.bf16.mxu0 %v197
    %667 = vmatmul.mubr.bf16.gmra.mrb[0].mxu0 %v196
    %v668 = vpop.f32.mrb[0].mxu0
    %v669 = vadd.f32 %v629, %v668
    %v670 = vpop.f32.mrb[0].mxu0
    %v671 = vpop.f32.mrb[0].mxu0
    %v672 = vpop.f32.mrb[0].mxu0
    %673 = vdwg.mxu0
    %674 = vmatprep.subr.bf16.mxu0 0
    %675 = vmatpush1.bf16.msra.mxu0 %v498
    %676 = vmatprep.subr.bf16.mxu0 0
    %677 = vmatpush1.bf16.msra.mxu0 %v499
    %678 = vmatprep.subr.bf16.mxu0 0
    %679 = vmatpush1.bf16.msra.mxu0 %v500
    %680 = vmatprep.subr.bf16.mxu0 0
    %681 = vmatpush1.bf16.msra.mxu0 %v501
    %682 = vmatprep.subr.bf16.mxu0 0
    %683 = vmatpush1.bf16.msra.mxu0 %v502
    %684 = vmatprep.subr.bf16.mxu0 0
    %685 = vmatpush1.bf16.msra.mxu0 %v503
    %686 = vmatprep.subr.bf16.mxu0 0
    %687 = vmatpush1.bf16.msra.mxu0 %v504
    %688 = vmatprep.subr.bf16.mxu0 0
    %689 = vmatpush1.bf16.msra.mxu0 %v505
    %690 = vmatprep.subr.bf16.mxu0 0
    %691 = vmatpush1.bf16.msra.mxu0 %v506
    %692 = vmatprep.subr.bf16.mxu0 0
    %693 = vmatpush1.bf16.msra.mxu0 %v507
    %694 = vmatprep.subr.bf16.mxu0 0
    %695 = vmatpush1.bf16.msra.mxu0 %v508
    %696 = vmatprep.subr.bf16.mxu0 0
    %697 = vmatpush1.bf16.msra.mxu0 %v509
    %698 = vmatprep.subr.bf16.mxu0 0
    %699 = vmatpush1.bf16.msra.mxu0 %v510
    %700 = vmatprep.subr.bf16.mxu0 0
    %701 = vmatpush1.bf16.msra.mxu0 %v511
    %702 = vmatprep.subr.bf16.mxu0 0
    %703 = vmatpush1.bf16.msra.mxu0 %v512
    %704 = vmatprep.subr.bf16.mxu0 0
    %705 = vmatpush1.bf16.msra.mxu0 %v513
    %706 = vmatprep.mubr.bf16.mxu0 %v199
    %707 = vmatmul.mubr.bf16.gmra.mrb[0].mxu0 %v198
    %v708 = vpop.f32.mrb[0].mxu0
    %v709 = vadd.f32 %v669, %v708
    %v710 = vpop.f32.mrb[0].mxu0
    %v711 = vpop.f32.mrb[0].mxu0
    %v712 = vpop.f32.mrb[0].mxu0
    %713 = vdwg.mxu0
    %714 = vmatprep.subr.bf16.mxu0 0
    %715 = vmatpush1.bf16.msra.mxu0 %v514
    %716 = vmatprep.subr.bf16.mxu0 0
    %717 = vmatpush1.bf16.msra.mxu0 %v515
    %718 = vmatprep.subr.bf16.mxu0 0
    %719 = vmatpush1.bf16.msra.mxu0 %v516
    %720 = vmatprep.subr.bf16.mxu0 0
    %721 = vmatpush1.bf16.msra.mxu0 %v517
    %722 = vmatprep.subr.bf16.mxu0 0
    %723 = vmatpush1.bf16.msra.mxu0 %v518
    %724 = vmatprep.subr.bf16.mxu0 0
    %725 = vmatpush1.bf16.msra.mxu0 %v519
    %726 = vmatprep.subr.bf16.mxu0 0
    %727 = vmatpush1.bf16.msra.mxu0 %v520
    %728 = vmatprep.subr.bf16.mxu0 0
    %729 = vmatpush1.bf16.msra.mxu0 %v521
    %730 = vmatprep.subr.bf16.mxu0 0
    %731 = vmatpush1.bf16.msra.mxu0 %v522
    %732 = vmatprep.subr.bf16.mxu0 0
    %733 = vmatpush1.bf16.msra.mxu0 %v523
    %734 = vmatprep.subr.bf16.mxu0 0
    %735 = vmatpush1.bf16.msra.mxu0 %v524
    %736 = vmatprep.subr.bf16.mxu0 0
    %737 = vmatpush1.bf16.msra.mxu0 %v525
    %738 = vmatprep.subr.bf16.mxu0 0
    %739 = vmatpush1.bf16.msra.mxu0 %v526
    %740 = vmatprep.subr.bf16.mxu0 0
    %741 = vmatpush1.bf16.msra.mxu0 %v527
    %742 = vmatprep.subr.bf16.mxu0 0
    %743 = vmatpush1.bf16.msra.mxu0 %v528
    %744 = vmatprep.subr.bf16.mxu0 0
    %745 = vmatpush1.bf16.msra.mxu0 %v529
    %746 = vmatprep.mubr.bf16.mxu0 %v201
    %747 = vmatmul.mubr.bf16.gmra.mrb[0].mxu0 %v200
    %v748 = vpop.f32.mrb[0].mxu0
    %v749 = vadd.f32 %v709, %v748
    %v750 = vpop.f32.mrb[0].mxu0
    %v751 = vpop.f32.mrb[0].mxu0
    %v752 = vpop.f32.mrb[0].mxu0
    %753 = vdwg.mxu0
    %p754 = scmp.eq.s32.totalorder 0, 0
    // Predicated region
    $region26: #{tpu_custom_call.1} parent=1 // pred_check
      %p755 = pneg %p754
    $region27: #{tpu_custom_call.1} parent=1 // pred_check_branch
      %757 = sbr.rel (%p755) target = $region29
    $region28: #{tpu_custom_call.1} parent=1 // pred_region
      %758 = vst [vmem:[#allocation7] sm:$0xff] 0.0
    $region29: #{tpu_custom_call.1} parent=1 // pred_fallthru
      _
    %v759 = vld [vmem:[#allocation7] sm:$0xff]
    %v760 = vadd.f32 %v759, %v749
    %761 = vst [vmem:[#allocation7] sm:$0xff] %v760
    // Predicated region
    $region30: #{tpu_custom_call.1} parent=1 // pred_check
      %p762 = pneg %p754
    $region31: #{tpu_custom_call.1} parent=1 // pred_check_branch
      %764 = sbr.rel (%p762) target = $region33
    $region32: #{tpu_custom_call.1} parent=1 // pred_region
      %v765 = vld [vmem:[#allocation7] sm:$0xff]
      %v766 = vld [vmem:[%s2] sm:$0x1]
      %v768 = vlaneseq
      %v769 = vshrl.u32 %v768, 7
      %v770 = vsub.s32 0, %v769
      %v771 = vrot.slane %v766, %v770
      %v773 = vadd.f32 %v765, %v771
      %vm774 = vcmask 80896
      %v775 = vsel %vm774, %v773, -inf
      %776 = vmax.xlane.f32.xlu0 %v775
      %v777 = vpop.xlane.xlu0 %776
      %v778 = vsub.f32 %v773, %v777
      %v779 = vmul.f32 %v778, 1.442695
      %v780 = vpow.pop %v779
      %v781 = vsel %vm774, %v780, 0.0
      %782 = vadd.xlane.f32.xlu0 %v781
      %v783 = vpop.xlane.xlu0 %782
      %v784 = vlog2.pop %v783
      %v785 = vmul.f32 %v784, 0.6931472
      %v786 = vsub.f32 %v778, %v785
      %v787 = vlaneseq
      %v788 = vand.u32 %v787, 127
      %v789 = vld [vmem:[%s3] sm:$0xff]
      %790 = vset.pattern.permute.xlu0 0
      %791 = vperm.xlu0 %790, %v789
      %v792 = vpop.permute.xlu0 %791
      %vm793 = vcmp.eq.s32.totalorder %v788, %v792
      %v794 = vsel %vm793, %v786, 0.0
      %v795 = vsel %vm774, %v794, 0.0
      %796 = vadd.xlane.f32.xlu0 %v795
      %v797 = vpop.xlane.xlu0 %796
      %v798 = vsub.f32 0.0, %v797
      %v799 = vmul.f32 %v778, 0.25
      %v800 = vmul.f32 %v799, 1.442695
      %v801 = vpow.pop %v800
      %v802 = vsel %vm774, %v801, 0.0
      %803 = vadd.xlane.f32.xlu0 %v802
      %v804 = vpop.xlane.xlu0 %803
      %v805 = vlog2.pop %v804
      %v806 = vmul.f32 %v805, 0.6931472
      %v807 = vsub.f32 %v799, %v806
      %v808 = vmul.f32 %v773, 0.25
      %vm809 = vcmask 605696
      %v810 = vsel %vm809, %v808, -inf
      %811 = vmax.xlane.f32.xlu0 %v810
      %v812 = vpop.xlane.xlu0 %811
      %v813 = vsub.f32 %v808, %v812
      %v814 = vmul.f32 %v813, 1.442695
      %v815 = vpow.pop %v814
      %817 = vrot.lane.b32.xlu0 %v815, 64
      %v818 = vpop.permute.xlu0 %817
      %v820 = vsel %vm774, %v818, 0.0
      %821 = vadd.xlane.f32.xlu0 %v820
      %v822 = vpop.xlane.xlu0 %821
      %v823 = vlog2.pop %v822
      %v824 = vmul.f32 %v823, 0.6931472
      %v825 = vsub.f32 %v813, %v824
      %v826 = vmul.f32 %v825, 1.442695
      %v827 = vpow.pop %v826
      %829 = vrot.lane.b32.xlu0 %v807, 64
      %v830 = vpop.permute.xlu0 %829
      %v832 = vsub.f32 %v825, %v830
      %v833 = vmul.f32 %v827, %v832
      %835 = vrot.lane.b32.xlu0 %v833, 64
      %v836 = vpop.permute.xlu0 %835
      %v838 = vsel %vm774, %v836, 0.0
      %839 = vadd.xlane.f32.xlu0 %v838
      %v840 = vpop.xlane.xlu0 %839
      %v841 = vmul.f32 %v798, 0.5
      %v842 = vmul.f32 %v840, 8.0
      %v843 = vadd.f32 %v841, %v842
      %v844 = vlaneseq
      %v845 = vshrl.u32 %v844, 7
      %s846 = smul.u32 0, 8
      %v847 = vstv %s846
      %v848 = vadd.s32 %v847, %v845
      %vm849 = vcmp.lt.s32.totalorder %v848, 2
      %v850 = vsel %vm849, %v843, 0.0
      %vm851 = vcmp.eq.s32.totalorder %v788, 127
      %v852 = vsel %vm851, %v850, %v773
      %853 = vst [vmem:[#allocation7] sm:$0xff] %v852
    $region33: #{tpu_custom_call.1} parent=1 // pred_fallthru
      _
    // Predicated region
    $region34: #{tpu_custom_call.1} parent=1 // pred_check
      _
    $region35: #{tpu_custom_call.1} parent=1 // pred_check_branch
      %855 = sbr.rel (0) target = $region37
    $region36: #{tpu_custom_call.1} parent=1 // pred_region
      %s857 = ssub.s32 128, 128
      %858 = vsyncadd [#allocation4], %s857
      %s860 = sshll.u32 [#allocation7], 4
      %s861 = int_to_ptr.vmem [resolvable:$true] %s860
      %863 = dma.vmem_to_hbm [thread:$0]  %s861, 128, %s4, [#allocation4]
    $region37: #{tpu_custom_call.1} parent=1 // pred_fallthru
      _
    // Predicated region
    $region38: #{tpu_custom_call.1} parent=1 // pred_check
      _
    $region39: #{tpu_custom_call.1} parent=1 // pred_check_branch
      %865 = sbr.rel (0) target = $region41
    $region40: #{tpu_custom_call.1} parent=1 // pred_region
      %866 = dma.done [#allocation4], 128
    $region41: #{tpu_custom_call.1} parent=1 // pred_fallthru
      _
    %867 = vsyncpa [#allocation3], 1
    %868 = vsyncpa [#allocation6], 1
    %869 = vsyncpa [#allocation4], 1

</llo_original>
